<compile_context>
chip_gen: v7x
topology: tpu7x:2x2x1
jax: 0.10.0
libtpu: 0.0.40
codegen_flags: <defaults>
</compile_context>

<pallas_src>
import math

import jax
import jax.numpy as jnp
from jax.experimental import pallas as pl
from jax.experimental.pallas import tpu as pltpu

FREQ_EMB_SIZE = 256        # frequency_embedding_size
EMBED_DIM = 32             # embedding_dim (small for the demo)
MAX_PERIOD = 10000.0
_LANE = 128


def _round_up(x, m):
    return ((x + m - 1) // m) * m


def _device_kind():
    try:
        return jax.devices()[0].device_kind.lower()
    except Exception:
        return ""


def _make_kernel(half, fuse_k, silu_bf16):
    """Build the fused kernel. `fuse_k`: single K=2*half dot (v6e/v7x) vs the
    K=half split (v5e). `silu_bf16`: do the SiLU in bf16 (v6e/v7x only)."""

    def kernel(freqs_ref, t_ref, w1_ref, b1_ref, w2_ref, b2_ref, out_ref,
               emb_ref):
        # freqs_ref: [1, half]        f32  (resident)
        # t_ref:     [tb, 1]          f32  (streamed)
        # w1_ref:    [2*half, D_pad]       (resident, f32 or bf16)
        # b1_ref:    [1, D_pad]       f32  (resident)
        # w2_ref:    [D_pad, D_pad]        (resident, f32 or bf16)
        # b2_ref:    [1, D_pad]       f32  (resident)
        # out_ref:   [tb, D_pad]      f32  (streamed)
        # emb_ref:   [tb, 2*half]     VMEM scratch in matmul dtype
        mm_dtype = emb_ref.dtype

        # Sinusoid in f32 (args may be thousands of radians); only the
        # bounded sin/cos outputs are narrowed.  Writing each into scratch
        # right away keeps at most two [tb, half] temporaries live.
        args = t_ref[...] * freqs_ref[...]                   # [tb, half] f32
        emb_ref[:, :half] = jnp.sin(args).astype(mm_dtype)
        emb_ref[:, half:] = jnp.cos(args).astype(mm_dtype)

        if fuse_k:
            # emb = concat([sin, cos]) already materialized in scratch ->
            # one MXU-depth-native K=2*half push.
            h = jnp.dot(emb_ref[...], w1_ref[...],
                        preferred_element_type=jnp.float32)
        else:
            # v5e: two K=half pushes are native for the 4x128^2 MXU.
            h = jnp.dot(emb_ref[:, :half], w1_ref[:half, :],
                        preferred_element_type=jnp.float32)
            h = h + jnp.dot(emb_ref[:, half:], w1_ref[half:, :],
                            preferred_element_type=jnp.float32)
        h = h + b1_ref[...]                                   # f32 bias add

        if silu_bf16:
            h16 = h.astype(jnp.bfloat16)
            act = (h16 * jax.nn.sigmoid(h16)).astype(w2_ref.dtype)
        else:
            act = (h * jax.nn.sigmoid(h)).astype(w2_ref.dtype)

        out = jnp.dot(act, w2_ref[...],
                      preferred_element_type=jnp.float32) + b2_ref[...]
        out_ref[...] = out.astype(out_ref.dtype)

    return kernel


def timestep_embedder(t, w1, b1, w2, b2, *, tile_b=None,
                      matmul_dtype=jnp.bfloat16, max_period=MAX_PERIOD):
    """t: [B] timesteps; w1: [F, D]; b1: [D]; w2: [D, D]; b2: [D].

    Weights are expected as [in, out] (transpose PyTorch nn.Linear weights).
    Returns [B, D] f32, matching the PyTorch TimestepEmbedder forward.
    """
    B = t.shape[0]
    freq_size, D = w1.shape
    assert freq_size % 2 == 0, "odd frequency_embedding_size not supported"
    # TODO(synk): the PyTorch module with odd frequency_embedding_size would
    # need a zero-padded last column; only the even case is implemented.
    half = freq_size // 2

    f32 = jnp.float32
    mm_dtype = jnp.dtype(matmul_dtype)

    kind = _device_kind()
    is_v5 = "v5" in kind
    num_tc = 2 if "v7" in kind else 1          # v7x: 2 TensorCores per chip

    fuse_k = not is_v5
    silu_bf16 = (mm_dtype == jnp.dtype(jnp.bfloat16)) and not is_v5

    # Lane-dense padding of the embedding dim (multiple of 128).
    d_pad = _round_up(D, _LANE)

    # Batch tiling: balanced tiles (minimal pad), >= num_tc grid steps so
    # both v7x cores get work, never tiles that are pure padding.
    if tile_b is None:
        tile_b = 256 if num_tc > 1 else 512
    n_tiles = max(pl.cdiv(B, tile_b), num_tc)
    n_tiles = min(n_tiles, max(1, pl.cdiv(B, 8)))
    tb = _round_up(pl.cdiv(B, n_tiles), 8)
    b_pad = n_tiles * tb

    # Resident frequency table (hoisted out of the kernel).
    freqs = jnp.exp(
        -math.log(max_period) * jnp.arange(half, dtype=f32) / half
    ).reshape(1, half)

    # Zero-padded parameters (zero pad rows/cols keep the result exact).
    w1_p = jnp.zeros((freq_size, d_pad), mm_dtype).at[:, :D].set(
        w1.astype(mm_dtype))
    w2_p = jnp.zeros((d_pad, d_pad), mm_dtype).at[:D, :D].set(
        w2.astype(mm_dtype))
    b1_p = jnp.zeros((1, d_pad), f32).at[0, :D].set(b1.astype(f32))
    b2_p = jnp.zeros((1, d_pad), f32).at[0, :D].set(b2.astype(f32))
    t_p = jnp.zeros((b_pad, 1), f32).at[:B, 0].set(t.reshape(-1).astype(f32))

    mm_bytes = mm_dtype.itemsize
    resident_bytes = (half * 4 + freq_size * d_pad * mm_bytes + d_pad * 4
                      + d_pad * d_pad * mm_bytes + d_pad * 4)
    stream_bytes = 2 * (tb * 4 + tb * d_pad * 4)      # double-buffered t/out
    scratch_bytes = tb * freq_size * mm_bytes
    vmem_limit = int(min(100 << 20,
                         max(16 << 20,
                             2 * resident_bytes + stream_bytes
                             + scratch_bytes + (4 << 20))))

    cost = pl.CostEstimate(
        flops=2 * b_pad * (freq_size * d_pad + d_pad * d_pad)
              + 6 * b_pad * d_pad + b_pad * half,
        transcendentals=b_pad * (freq_size + d_pad),
        bytes_accessed=(t_p.size + freqs.size + b1_p.size + b2_p.size) * 4
                       + (w1_p.size + w2_p.size) * mm_bytes
                       + b_pad * d_pad * 4,
    )

    kernel = _make_kernel(half, fuse_k, silu_bf16)
    resident = lambda i: (0, 0)
    streamed = lambda i: (i, 0)

    def run(single_buffer_residents):
        res_kw = ({"pipeline_mode": pl.Buffered(1)}
                  if single_buffer_residents else {})
        in_specs = [
            pl.BlockSpec((1, half), resident, **res_kw),            # freqs
            pl.BlockSpec((tb, 1), streamed),                        # t
            pl.BlockSpec((freq_size, d_pad), resident, **res_kw),   # w1
            pl.BlockSpec((1, d_pad), resident, **res_kw),           # b1
            pl.BlockSpec((d_pad, d_pad), resident, **res_kw),       # w2
            pl.BlockSpec((1, d_pad), resident, **res_kw),           # b2
        ]
        return pl.pallas_call(
            kernel,
            out_shape=jax.ShapeDtypeStruct((b_pad, d_pad), f32),
            grid=(n_tiles,),
            in_specs=in_specs,
            out_specs=pl.BlockSpec((tb, d_pad), streamed),
            scratch_shapes=[pltpu.VMEM((tb, freq_size), mm_dtype)],
            compiler_params=pltpu.CompilerParams(
                dimension_semantics=("parallel",),
                vmem_limit_bytes=vmem_limit),
            cost_estimate=cost,
        )(freqs, t_p, w1_p, b1_p, w2_p, b2_p)

    try:
        out = run(True)
    except Exception:
        # Fallback if this JAX build rejects single-buffered (Buffered(1))
        # resident blocks: identical kernel, default double-buffering.
        out = run(False)

    return out[:B, :D]


def reference(t, w1, b1, w2, b2, max_period=MAX_PERIOD):
    """Pure-JAX reference matching the PyTorch module semantics."""
    half = w1.shape[0] // 2
    freqs = jnp.exp(-math.log(max_period)
                    * jnp.arange(half, dtype=jnp.float32) / half)
    args = t.reshape(-1, 1).astype(jnp.float32) * freqs[None, :]
    emb = jnp.concatenate([jnp.sin(args), jnp.cos(args)], axis=-1)
    h = emb @ w1 + b1
    h = h * jax.nn.sigmoid(h)
    return h @ w2 + b2


if __name__ == "__main__":
    key = jax.random.PRNGKey(0)
    k_t, k_w1, k_b1, k_w2, k_b2 = jax.random.split(key, 5)

    B = 8
    t = jax.random.uniform(k_t, (B,), dtype=jnp.float32) * 1000.0

    # Deterministic synthetic parameters ([in, out] layout).
    w1 = jax.random.normal(k_w1, (FREQ_EMB_SIZE, EMBED_DIM), jnp.float32) * 0.02
    b1 = jax.random.normal(k_b1, (EMBED_DIM,), jnp.float32) * 0.02
    w2 = jax.random.normal(k_w2, (EMBED_DIM, EMBED_DIM), jnp.float32) * 0.02
    b2 = jax.random.normal(k_b2, (EMBED_DIM,), jnp.float32) * 0.02

    ref = reference(t, w1, b1, w2, b2)

    # Default path: bf16 MXU operands, f32 accumulation / bias / sinusoid.
    out_bf16 = jax.block_until_ready(timestep_embedder(t, w1, b1, w2, b2))
    assert out_bf16.shape == (B, EMBED_DIM)
    assert jnp.allclose(out_bf16, ref, atol=2e-2, rtol=2e-2), \
        "bf16 path mismatch vs reference"

    # Full-precision path, tight tolerance.
    out_f32 = jax.block_until_ready(
        timestep_embedder(t, w1, b1, w2, b2, matmul_dtype=jnp.float32))
    assert jnp.allclose(out_f32, ref, atol=1e-4, rtol=1e-4), \
        "f32 path mismatch vs reference"

    print("KERNEL_OK")
</pallas_src>

<mosaic_0001>
module attributes {stable_mosaic.version = 11 : i64} {
  func.func @kernel(%arg0: i32, %arg1: memref<1x128xf32, #tpu.memory_space<vmem>>, %arg2: memref<8x1xf32, #tpu.memory_space<vmem>>, %arg3: memref<256x128xbf16, #tpu.memory_space<vmem>>, %arg4: memref<1x128xf32, #tpu.memory_space<vmem>>, %arg5: memref<128x128xbf16, #tpu.memory_space<vmem>>, %arg6: memref<1x128xf32, #tpu.memory_space<vmem>>, %arg7: memref<8x128xf32, #tpu.memory_space<vmem>>, %arg8: memref<8x256xbf16, #tpu.memory_space<vmem>>) attributes {dimension_semantics = [#tpu.dimension_semantics<parallel>], iteration_bounds = array<i64: 1>, scalar_prefetch = 0 : i64, scratch_operands = 1 : i64, tpu.core_type = #tpu.core_type<tc>, window_params = [{pipeline_mode = #tpu.pipeline_mode<synchronous>, transform_indices = @transform_0, window_bounds = array<i64: 1, 128>}, {transform_indices = @transform_1, window_bounds = array<i64: 8, 1>}, {pipeline_mode = #tpu.pipeline_mode<synchronous>, transform_indices = @transform_2, window_bounds = array<i64: 256, 128>}, {pipeline_mode = #tpu.pipeline_mode<synchronous>, transform_indices = @transform_3, window_bounds = array<i64: 1, 128>}, {pipeline_mode = #tpu.pipeline_mode<synchronous>, transform_indices = @transform_4, window_bounds = array<i64: 128, 128>}, {pipeline_mode = #tpu.pipeline_mode<synchronous>, transform_indices = @transform_5, window_bounds = array<i64: 1, 128>}, {transform_indices = @transform_6, window_bounds = array<i64: 8, 128>}]} {
    %c0 = arith.constant 0 : index
    %c0_0 = arith.constant 0 : index
    %0 = vector.load %arg2[%c0, %c0_0] : memref<8x1xf32, #tpu.memory_space<vmem>>, vector<8x1xf32>
    %c0_1 = arith.constant 0 : index
    %c0_2 = arith.constant 0 : index
    %1 = vector.load %arg1[%c0_1, %c0_2] : memref<1x128xf32, #tpu.memory_space<vmem>>, vector<1x128xf32>
    %2 = vector.broadcast %0 : vector<8x1xf32> to vector<8x128xf32>
    %3 = vector.broadcast %1 : vector<1x128xf32> to vector<8x128xf32>
    %4 = arith.mulf %2, %3 : vector<8x128xf32>
    %5 = math.sin %4 : vector<8x128xf32>
    %6 = arith.truncf %5 : vector<8x128xf32> to vector<8x128xbf16>
    %c0_3 = arith.constant 0 : index
    %c0_4 = arith.constant 0 : index
    %7 = vector.load %arg8[%c0_3, %c0_4] : memref<8x256xbf16, #tpu.memory_space<vmem>>, vector<8x128xbf16>
    tpu.vector_store %arg8[%c0_3, %c0_4], %6 {strides = array<i32>} : memref<8x256xbf16, #tpu.memory_space<vmem>>, vector<8x128xbf16>,
    %8 = math.cos %4 : vector<8x128xf32>
    %9 = arith.truncf %8 : vector<8x128xf32> to vector<8x128xbf16>
    %c0_5 = arith.constant 0 : index
    %c128 = arith.constant 128 : index
    %10 = vector.load %arg8[%c0_5, %c128] : memref<8x256xbf16, #tpu.memory_space<vmem>>, vector<8x128xbf16>
    tpu.vector_store %arg8[%c0_5, %c128], %9 {strides = array<i32>} : memref<8x256xbf16, #tpu.memory_space<vmem>>, vector<8x128xbf16>,
    %c0_6 = arith.constant 0 : index
    %c0_7 = arith.constant 0 : index
    %11 = vector.load %arg8[%c0_6, %c0_7] : memref<8x256xbf16, #tpu.memory_space<vmem>>, vector<8x256xbf16>
    %c0_8 = arith.constant 0 : index
    %c0_9 = arith.constant 0 : index
    %12 = vector.load %arg3[%c0_8, %c0_9] : memref<256x128xbf16, #tpu.memory_space<vmem>>, vector<256x128xbf16>
    %cst = arith.constant dense<0.000000e+00> : vector<8x128xf32>
    %13 = tpu.matmul %11, %12, %cst {dimension_numbers = #tpu.dot_dimension_numbers<[1], [0], [0], [1], [0, 0, 1, 1], [], []>} : vector<8x256xbf16>, vector<256x128xbf16>, vector<8x128xf32> -> vector<8x128xf32>
    %c0_10 = arith.constant 0 : index
    %c0_11 = arith.constant 0 : index
    %14 = vector.load %arg4[%c0_10, %c0_11] : memref<1x128xf32, #tpu.memory_space<vmem>>, vector<1x128xf32>
    %15 = vector.broadcast %14 : vector<1x128xf32> to vector<8x128xf32>
    %16 = arith.addf %13, %15 : vector<8x128xf32>
    %17 = arith.truncf %16 : vector<8x128xf32> to vector<8x128xbf16>
    %18 = arith.negf %17 : vector<8x128xbf16>
    %19 = math.exp %18 : vector<8x128xbf16>
    %cst_12 = arith.constant 1.000000e+00 : bf16
    %20 = vector.broadcast %cst_12 : bf16 to vector<8x128xbf16>
    %21 = arith.addf %20, %19 : vector<8x128xbf16>
    %22 = arith.divf %20, %21 : vector<8x128xbf16>
    %23 = arith.mulf %17, %22 : vector<8x128xbf16>
    %c0_13 = arith.constant 0 : index
    %c0_14 = arith.constant 0 : index
    %24 = vector.load %arg5[%c0_13, %c0_14] : memref<128x128xbf16, #tpu.memory_space<vmem>>, vector<128x128xbf16>
    %cst_15 = arith.constant dense<0.000000e+00> : vector<8x128xf32>
    %25 = tpu.matmul %23, %24, %cst_15 {dimension_numbers = #tpu.dot_dimension_numbers<[1], [0], [0], [1], [0, 0, 1, 1], [], []>} : vector<8x128xbf16>, vector<128x128xbf16>, vector<8x128xf32> -> vector<8x128xf32>
    %c0_16 = arith.constant 0 : index
    %c0_17 = arith.constant 0 : index
    %26 = vector.load %arg6[%c0_16, %c0_17] : memref<1x128xf32, #tpu.memory_space<vmem>>, vector<1x128xf32>
    %27 = vector.broadcast %26 : vector<1x128xf32> to vector<8x128xf32>
    %28 = arith.addf %25, %27 : vector<8x128xf32>
    %c0_18 = arith.constant 0 : index
    %c0_19 = arith.constant 0 : index
    %29 = vector.load %arg7[%c0_18, %c0_19] : memref<8x128xf32, #tpu.memory_space<vmem>>, vector<8x128xf32>
    tpu.vector_store %arg7[%c0_18, %c0_19], %28 {strides = array<i32>} : memref<8x128xf32, #tpu.memory_space<vmem>>, vector<8x128xf32>,
    return
  }
  func.func @transform_0(%arg0: i32) -> (i32, i32) {
    %c0_i32 = arith.constant 0 : i32
    %c0_i32_0 = arith.constant 0 : i32
    %c0_i32_1 = arith.constant 0 : i32
    return %c0_i32, %c0_i32_0 : i32, i32
  }
  func.func @transform_1(%arg0: i32) -> (i32, i32) {
    %c0_i32 = arith.constant 0 : i32
    %c0_i32_0 = arith.constant 0 : i32
    return %arg0, %c0_i32 : i32, i32
  }
  func.func @transform_2(%arg0: i32) -> (i32, i32) {
    %c0_i32 = arith.constant 0 : i32
    %c0_i32_0 = arith.constant 0 : i32
    %c0_i32_1 = arith.constant 0 : i32
    return %c0_i32, %c0_i32_0 : i32, i32
  }
  func.func @transform_3(%arg0: i32) -> (i32, i32) {
    %c0_i32 = arith.constant 0 : i32
    %c0_i32_0 = arith.constant 0 : i32
    %c0_i32_1 = arith.constant 0 : i32
    return %c0_i32, %c0_i32_0 : i32, i32
  }
  func.func @transform_4(%arg0: i32) -> (i32, i32) {
    %c0_i32 = arith.constant 0 : i32
    %c0_i32_0 = arith.constant 0 : i32
    %c0_i32_1 = arith.constant 0 : i32
    return %c0_i32, %c0_i32_0 : i32, i32
  }
  func.func @transform_5(%arg0: i32) -> (i32, i32) {
    %c0_i32 = arith.constant 0 : i32
    %c0_i32_0 = arith.constant 0 : i32
    %c0_i32_1 = arith.constant 0 : i32
    return %c0_i32, %c0_i32_0 : i32, i32
  }
  func.func @transform_6(%arg0: i32) -> (i32, i32) {
    %c0_i32 = arith.constant 0 : i32
    %c0_i32_0 = arith.constant 0 : i32
    return %arg0, %c0_i32 : i32, i32
  }
}

module attributes {stable_mosaic.version = 11 : i64} {
  func.func @kernel(%arg0: i32, %arg1: memref<1x128xf32, #tpu.memory_space<vmem>>, %arg2: memref<8x1xf32, #tpu.memory_space<vmem>>, %arg3: memref<256x128xbf16, #tpu.memory_space<vmem>>, %arg4: memref<1x128xf32, #tpu.memory_space<vmem>>, %arg5: memref<128x128xbf16, #tpu.memory_space<vmem>>, %arg6: memref<1x128xf32, #tpu.memory_space<vmem>>, %arg7: memref<8x128xf32, #tpu.memory_space<vmem>>, %arg8: memref<8x256xbf16, #tpu.memory_space<vmem>>) attributes {dimension_semantics = [#tpu.dimension_semantics<parallel>], iteration_bounds = array<i64: 1>, scalar_prefetch = 0 : i64, scratch_operands = 1 : i64, tpu.core_type = #tpu.core_type<tc>, window_params = [{pipeline_mode = #tpu.pipeline_mode<synchronous>, transform_indices = @transform_0, window_bounds = array<i64: 1, 128>}, {transform_indices = @transform_1, window_bounds = array<i64: 8, 1>}, {pipeline_mode = #tpu.pipeline_mode<synchronous>, transform_indices = @transform_2, window_bounds = array<i64: 256, 128>}, {pipeline_mode = #tpu.pipeline_mode<synchronous>, transform_indices = @transform_3, window_bounds = array<i64: 1, 128>}, {pipeline_mode = #tpu.pipeline_mode<synchronous>, transform_indices = @transform_4, window_bounds = array<i64: 128, 128>}, {pipeline_mode = #tpu.pipeline_mode<synchronous>, transform_indices = @transform_5, window_bounds = array<i64: 1, 128>}, {transform_indices = @transform_6, window_bounds = array<i64: 8, 128>}]} {
    %c0 = arith.constant 0 : index
    %c0_0 = arith.constant 0 : index
    %0 = vector.load %arg2[%c0, %c0_0] : memref<8x1xf32, #tpu.memory_space<vmem>>, vector<8x1xf32>
    %c0_1 = arith.constant 0 : index
    %c0_2 = arith.constant 0 : index
    %1 = vector.load %arg1[%c0_1, %c0_2] : memref<1x128xf32, #tpu.memory_space<vmem>>, vector<1x128xf32>
    %2 = vector.broadcast %0 : vector<8x1xf32> to vector<8x128xf32>
    %3 = vector.broadcast %1 : vector<1x128xf32> to vector<8x128xf32>
    %4 = arith.mulf %2, %3 : vector<8x128xf32>
    %5 = math.sin %4 : vector<8x128xf32>
    %6 = arith.truncf %5 : vector<8x128xf32> to vector<8x128xbf16>
    %c0_3 = arith.constant 0 : index
    %c0_4 = arith.constant 0 : index
    %7 = vector.load %arg8[%c0_3, %c0_4] : memref<8x256xbf16, #tpu.memory_space<vmem>>, vector<8x128xbf16>
    tpu.vector_store %arg8[%c0_3, %c0_4], %6 {strides = array<i32>} : memref<8x256xbf16, #tpu.memory_space<vmem>>, vector<8x128xbf16>,
    %8 = math.cos %4 : vector<8x128xf32>
    %9 = arith.truncf %8 : vector<8x128xf32> to vector<8x128xbf16>
    %c0_5 = arith.constant 0 : index
    %c128 = arith.constant 128 : index
    %10 = vector.load %arg8[%c0_5, %c128] : memref<8x256xbf16, #tpu.memory_space<vmem>>, vector<8x128xbf16>
    tpu.vector_store %arg8[%c0_5, %c128], %9 {strides = array<i32>} : memref<8x256xbf16, #tpu.memory_space<vmem>>, vector<8x128xbf16>,
    %c0_6 = arith.constant 0 : index
    %c0_7 = arith.constant 0 : index
    %11 = vector.load %arg8[%c0_6, %c0_7] : memref<8x256xbf16, #tpu.memory_space<vmem>>, vector<8x256xbf16>
    %c0_8 = arith.constant 0 : index
    %c0_9 = arith.constant 0 : index
    %12 = vector.load %arg3[%c0_8, %c0_9] : memref<256x128xbf16, #tpu.memory_space<vmem>>, vector<256x128xbf16>
    %cst = arith.constant dense<0.000000e+00> : vector<8x128xf32>
    %13 = tpu.matmul %11, %12, %cst {dimension_numbers = #tpu.dot_dimension_numbers<[1], [0], [0], [1], [0, 0, 1, 1], [], []>} : vector<8x256xbf16>, vector<256x128xbf16>, vector<8x128xf32> -> vector<8x128xf32>
    %c0_10 = arith.constant 0 : index
    %c0_11 = arith.constant 0 : index
    %14 = vector.load %arg4[%c0_10, %c0_11] : memref<1x128xf32, #tpu.memory_space<vmem>>, vector<1x128xf32>
    %15 = vector.broadcast %14 : vector<1x128xf32> to vector<8x128xf32>
    %16 = arith.addf %13, %15 : vector<8x128xf32>
    %17 = arith.truncf %16 : vector<8x128xf32> to vector<8x128xbf16>
    %18 = arith.negf %17 : vector<8x128xbf16>
    %19 = math.exp %18 : vector<8x128xbf16>
    %cst_12 = arith.constant 1.000000e+00 : bf16
    %20 = vector.broadcast %cst_12 : bf16 to vector<8x128xbf16>
    %21 = arith.addf %20, %19 : vector<8x128xbf16>
    %22 = arith.divf %20, %21 : vector<8x128xbf16>
    %23 = arith.mulf %17, %22 : vector<8x128xbf16>
    %c0_13 = arith.constant 0 : index
    %c0_14 = arith.constant 0 : index
    %24 = vector.load %arg5[%c0_13, %c0_14] : memref<128x128xbf16, #tpu.memory_space<vmem>>, vector<128x128xbf16>
    %cst_15 = arith.constant dense<0.000000e+00> : vector<8x128xf32>
    %25 = tpu.matmul %23, %24, %cst_15 {dimension_numbers = #tpu.dot_dimension_numbers<[1], [0], [0], [1], [0, 0, 1, 1], [], []>} : vector<8x128xbf16>, vector<128x128xbf16>, vector<8x128xf32> -> vector<8x128xf32>
    %c0_16 = arith.constant 0 : index
    %c0_17 = arith.constant 0 : index
    %26 = vector.load %arg6[%c0_16, %c0_17] : memref<1x128xf32, #tpu.memory_space<vmem>>, vector<1x128xf32>
    %27 = vector.broadcast %26 : vector<1x128xf32> to vector<8x128xf32>
    %28 = arith.addf %25, %27 : vector<8x128xf32>
    %c0_18 = arith.constant 0 : index
    %c0_19 = arith.constant 0 : index
    %29 = vector.load %arg7[%c0_18, %c0_19] : memref<8x128xf32, #tpu.memory_space<vmem>>, vector<8x128xf32>
    tpu.vector_store %arg7[%c0_18, %c0_19], %28 {strides = array<i32>} : memref<8x128xf32, #tpu.memory_space<vmem>>, vector<8x128xf32>,
    return
  }
  func.func @transform_0(%arg0: i32) -> (i32, i32) {
    %c0_i32 = arith.constant 0 : i32
    %c0_i32_0 = arith.constant 0 : i32
    %c0_i32_1 = arith.constant 0 : i32
    return %c0_i32, %c0_i32_0 : i32, i32
  }
  func.func @transform_1(%arg0: i32) -> (i32, i32) {
    %c0_i32 = arith.constant 0 : i32
    %c0_i32_0 = arith.constant 0 : i32
    return %arg0, %c0_i32 : i32, i32
  }
  func.func @transform_2(%arg0: i32) -> (i32, i32) {
    %c0_i32 = arith.constant 0 : i32
    %c0_i32_0 = arith.constant 0 : i32
    %c0_i32_1 = arith.constant 0 : i32
    return %c0_i32, %c0_i32_0 : i32, i32
  }
  func.func @transform_3(%arg0: i32) -> (i32, i32) {
    %c0_i32 = arith.constant 0 : i32
    %c0_i32_0 = arith.constant 0 : i32
    %c0_i32_1 = arith.constant 0 : i32
    return %c0_i32, %c0_i32_0 : i32, i32
  }
  func.func @transform_4(%arg0: i32) -> (i32, i32) {
    %c0_i32 = arith.constant 0 : i32
    %c0_i32_0 = arith.constant 0 : i32
    %c0_i32_1 = arith.constant 0 : i32
    return %c0_i32, %c0_i32_0 : i32, i32
  }
  func.func @transform_5(%arg0: i32) -> (i32, i32) {
    %c0_i32 = arith.constant 0 : i32
    %c0_i32_0 = arith.constant 0 : i32
    %c0_i32_1 = arith.constant 0 : i32
    return %c0_i32, %c0_i32_0 : i32, i32
  }
  func.func @transform_6(%arg0: i32) -> (i32, i32) {
    %c0_i32 = arith.constant 0 : i32
    %c0_i32_0 = arith.constant 0 : i32
    return %arg0, %c0_i32 : i32, i32
  }
}

</mosaic_0001>

<llo_original>
// kernel: tpu_custom_call.1
$region0: #{tpu_custom_call.1}
  #allocation0 [shape = 'u32[]', space=smem, size = 0x4, offset = 0x4, fixed_abs, tag = 'smem constant byte address 0x4 - core index']
  #allocation1 [shape = 'u32[144,128]{1,0:T(1,128)}', space=vmem, size = 0x12000, scoped, tag = 'internal scratch']
  #allocation2 [shape = 'bf16[8,256]{1,0:T(8,128)(2,1)}', space=vmem, size = 0x1000, scoped, tag = 'scratch operand']
  %s0 = inlined_call_operand.vmem [shape: f32[1,128], index: 0, kind: input, shape index: {}]
  %s1 = inlined_call_operand.vmem [shape: f32[8,1], index: 1, kind: input, shape index: {}]
  %s2 = inlined_call_operand.hbm [shape: bf16[256,128], index: 2, kind: input, shape index: {}]
  %s3 = inlined_call_operand.vmem [shape: f32[1,128], index: 3, kind: input, shape index: {}]
  %s4 = inlined_call_operand.hbm [shape: bf16[128,128], index: 4, kind: input, shape index: {}]
  %s5 = inlined_call_operand.vmem [shape: f32[1,128], index: 5, kind: input, shape index: {}]
  %s6 = inlined_call_operand.hbm [shape: f32[8,128], index: 6, kind: output, shape index: {}]
  %s7 = sld [smem:[#allocation0]]
  $region42: #{tpu_custom_call.1} parent=0
    _
  %s9 = ssub.s32 1, %s7
  %s10 = scalar_select 0, %s9, %s7
  $region1: #{tpu_custom_call.1} parent=0
    #allocation3 [shape = 'u8[65536]{0}', space=vmem, size = 0x10000, scoped, tag = 'input window, operand 2, single buffered']
    #allocation4 [shape = 's32[1]{0}', space=sflag, size = 0x4, scoped, tag = 'scoped memory for tpu_custom_call.1']
    #allocation5 [shape = 's32[1]{0}', space=sflag, size = 0x4, scoped, tag = 'scoped memory for tpu_custom_call.1']
    #allocation6 [shape = 'u8[32768]{0}', space=vmem, size = 0x8000, scoped, tag = 'input window, operand 4, single buffered']
    #allocation7 [shape = 's32[1]{0}', space=sflag, size = 0x4, scoped, tag = 'scoped memory for tpu_custom_call.1']
    #allocation8 [shape = 'u8[4096]{0}', space=vmem, size = 0x1000, scoped, tag = 'output window, operand 0, single buffered']
    %11 = vsyncpa [#allocation4], 0
    %12 = vsyncpa [#allocation7], 0
    %13 = vsyncpa [#allocation5], 0
    // Predicated region
    $region2: #{tpu_custom_call.1} parent=1 // pred_check
      _
    $region3: #{tpu_custom_call.1} parent=1 // pred_check_branch
      %15 = sbr.rel (0) target = $region5
    $region4: #{tpu_custom_call.1} parent=1 // pred_region
      _
    $region5: #{tpu_custom_call.1} parent=1 // pred_fallthru
      _
    // Predicated region
    $region6: #{tpu_custom_call.1} parent=1 // pred_check
      _
    $region7: #{tpu_custom_call.1} parent=1 // pred_check_branch
      %17 = sbr.rel (0) target = $region9
    $region8: #{tpu_custom_call.1} parent=1 // pred_region
      _
    $region9: #{tpu_custom_call.1} parent=1 // pred_fallthru
      _
    // Predicated region
    $region10: #{tpu_custom_call.1} parent=1 // pred_check
      _
    $region11: #{tpu_custom_call.1} parent=1 // pred_check_branch
      %19 = sbr.rel (0) target = $region13
    $region12: #{tpu_custom_call.1} parent=1 // pred_region
      %s21 = ssub.s32 2048, 2048
      %22 = vsyncadd [#allocation4], %s21
      %s23 = sshll.u32 [#allocation3], 4
      %s24 = int_to_ptr.vmem [resolvable:$true] %s23
      %29 = dma.hbm_to_vmem [thread:$0]  %s2, 2048, %s24, [#allocation4], 64, 64, 4
    $region13: #{tpu_custom_call.1} parent=1 // pred_fallthru
      _
    // Predicated region
    $region14: #{tpu_custom_call.1} parent=1 // pred_check
      _
    $region15: #{tpu_custom_call.1} parent=1 // pred_check_branch
      %31 = sbr.rel (0) target = $region17
    $region16: #{tpu_custom_call.1} parent=1 // pred_region
      _
    $region17: #{tpu_custom_call.1} parent=1 // pred_fallthru
      _
    // Predicated region
    $region18: #{tpu_custom_call.1} parent=1 // pred_check
      _
    $region19: #{tpu_custom_call.1} parent=1 // pred_check_branch
      %33 = sbr.rel (0) target = $region21
    $region20: #{tpu_custom_call.1} parent=1 // pred_region
      %s35 = ssub.s32 1024, 1024
      %36 = vsyncadd [#allocation7], %s35
      %s37 = sshll.u32 [#allocation6], 4
      %s38 = int_to_ptr.vmem [resolvable:$true] %s37
      %43 = dma.hbm_to_vmem [thread:$0]  %s4, 1024, %s38, [#allocation7], 64, 64, 4
    $region21: #{tpu_custom_call.1} parent=1 // pred_fallthru
      _
    // Predicated region
    $region22: #{tpu_custom_call.1} parent=1 // pred_check
      _
    $region23: #{tpu_custom_call.1} parent=1 // pred_check_branch
      %45 = sbr.rel (0) target = $region25
    $region24: #{tpu_custom_call.1} parent=1 // pred_region
      _
    $region25: #{tpu_custom_call.1} parent=1 // pred_fallthru
      _
    // Predicated region
    $region26: #{tpu_custom_call.1} parent=1 // pred_check
      _
    $region27: #{tpu_custom_call.1} parent=1 // pred_check_branch
      %47 = sbr.rel (0) target = $region29
    $region28: #{tpu_custom_call.1} parent=1 // pred_region
      %48 = dma.done [#allocation4], 2048
    $region29: #{tpu_custom_call.1} parent=1 // pred_fallthru
      _
    // Predicated region
    $region30: #{tpu_custom_call.1} parent=1 // pred_check
      _
    $region31: #{tpu_custom_call.1} parent=1 // pred_check_branch
      %50 = sbr.rel (0) target = $region33
    $region32: #{tpu_custom_call.1} parent=1 // pred_region
      %51 = dma.done [#allocation7], 1024
    $region33: #{tpu_custom_call.1} parent=1 // pred_fallthru
      _
    %v54 = vld [vmem:[%s1] sm:$0xff]
    %v55 = vld [vmem:[%s0] sm:$0x1]
    %57 = vset.pattern.permute.xlu0 0
    %58 = vperm.xlu0 %57, %v54
    %v59 = vpop.permute.xlu0 %58
    %v62 = vlaneseq
    %v63 = vshrl.u32 %v62, 7
    %v64 = vsub.s32 0, %v63
    %v65 = vrot.slane %v55, %v64
    %v67 = vmul.f32 %v59, %v65
    %v68 = vand.u32 2147483647, %v67
    %vm69 = vcmp.le.f32.partialorder %v68, 0.7853982
    %vm70 = vcmp.lt.s32.totalorder %v67, 0
    %v71 = vand.u32 %v67, 2139095040
    %v72 = vshrl.u32 %v71, 23
    %v73 = vsub.s32 %v72, 127
    %v74 = vand.u32 2147483647, %v67
    %v75 = vand.u32 %v74, 8388607
    %v76 = vor.u32 %v75, 8388608
    %v77 = vsub.s32 0, %v76
    %v78 = vadd.s32 %v73, 1
    %vm79 = vcmp.gt.s32.totalorder %v78, 0
    %v80 = vsel %vm79, %v78, 0
    %v81 = vshrl.u32 %v80, 5
    %v82 = vand.u32 %v80, 31
    %v83 = vsub.s32 32, %v82
    %v84 = vshrl.u32 683565275, %v83
    %v85 = vshll.u32 683565275, %v82
    %v86 = vshrl.u32 2475754826, %v83
    %v87 = vor.u32 %v85, %v86
    %v88 = vshll.u32 2475754826, %v82
    %v89 = vshrl.u32 2131351028, %v83
    %v90 = vor.u32 %v88, %v89
    %v91 = vshll.u32 2131351028, %v82
    %v92 = vshrl.u32 2102212464, %v83
    %v93 = vor.u32 %v91, %v92
    %v94 = vshll.u32 2102212464, %v82
    %v95 = vshrl.u32 920167782, %v83
    %v96 = vor.u32 %v94, %v95
    %v97 = vshll.u32 920167782, %v82
    %v98 = vshrl.u32 1326507024, %v83
    %v99 = vor.u32 %v97, %v98
    %vm100 = vcmp.lt.s32.totalorder %v81, 1
    %vm101 = vcmp.lt.s32.totalorder %v81, 2
    %vm102 = vcmp.lt.s32.totalorder %v81, 3
    %vm103 = vcmp.lt.s32.totalorder %v81, 4
    %v104 = vsel %vm100, %v84, %v87
    %v105 = vsel %vm103, %v93, 2102212464
    %v106 = vsel %vm102, %v90, %v105
    %v107 = vsel %vm101, %v104, %v106
    %v108 = vsel %vm100, %v87, %v90
    %v109 = vsel %vm103, %v96, 920167782
    %v110 = vsel %vm102, %v93, %v109
    %v111 = vsel %vm101, %v108, %v110
    %v112 = vsel %vm100, %v90, %v93
    %v113 = vsel %vm103, %v99, 1326507024
    %v114 = vsel %vm102, %v96, %v113
    %v115 = vsel %vm101, %v112, %v114
    %v116 = vshll.u32 %v76, 8
    %v117 = vmul.u32.u64.compose %v116, %v115
    %v118 = vextract.low.u32 %v117
    %v119 = vextract.high.u32 %v117
    %v120 = vmul.u32.u64.compose %v116, %v111
    %v121 = vextract.low.u32 %v120
    %v122 = vextract.high.u32 %v120
    %v123 = vmul.u32 %v116, %v107
    %v124 = vadd.s32 %v119, %v121
    %vm125 = vc.u32 %v119, %v121
    %v126 = vadd.s32 %v122, 1
    %v127 = vsel %vm125, %v126, %v122
    %v128 = vadd.s32 %v123, %v127
    %v129 = vadd.s32 %v128, 536870912
    %v130 = vshrl.u32 %v129, 30
    %v131 = vshll.u32 %v130, 30
    %v132 = vsub.s32 %v128, %v131
    %vm133 = vcmp.lt.s32.totalorder %v132, 0
    %v134 = vsub.s32 0, %v132
    %v135 = vsel %vm133, %v134, %v132
    %v136 = vclz %v135
    %v137 = vsub.s32 %v136, 2
    %vm138 = vcmp.gt.s32.totalorder 0, %v137
    %v139 = vsel %vm138, 0, %v137
    %v140 = vsub.s32 32, %v139
    %v141 = vshll.u32 %v132, %v139
    %v142 = vshrl.u32 %v124, %v140
    %v143 = vor.u32 %v141, %v142
    %v144 = vsub.s32 4294967266, %v139
    %v145 = vadd.s32 %v144, 127
    %v146 = vshll.u32 %v145, 23
    %v147 = vor.u32 4788187, %v146
    %v148 = vand.u32 2147483647, %v147
    %v150 = vcvt.s32.f32 %v143
    %v151 = vmul.f32 %v150, %v148
    %v152 = vxor.u32 %v151, 2147483648
    %v153 = vsel %vm70, %v152, %v151
    %v154 = vsub.s32 4, %v130
    %v155 = vsel %vm70, %v154, %v130
    %v156 = vsel %vm69, %v67, %v153
    %v157 = vsel %vm69, 0, %v155
    %v158 = vcosq.f32.pop %v156
    %v159 = vsinq.f32.pop %v156
    %vm160 = vweird.f32 %v67
    %v161 = vadd.s32 %v157, 3
    %v162 = vand.u32 %v161, 3
    %vm163 = vcmp.lt.s32.totalorder %v162, 2
    %vm164 = vcmp.eq.s32.totalorder %v162, 0
    %v165 = vxor.u32 %v159, 2147483648
    %v166 = vsel %vm164, %v158, %v165
    %vm167 = vcmp.eq.s32.totalorder %v162, 2
    %v168 = vxor.u32 %v158, 2147483648
    %v169 = vsel %vm167, %v168, %v159
    %v170 = vsel %vm163, %v166, %v169
    %v171 = vsel %vm160, nan, %v170
    %v172 = vpack.c.bf16 %v171, %v171
    %173 = vst [vmem:[#allocation2] sm:$0xf] %v172
    %v174 = vand.u32 2147483647, %v67
    %vm175 = vcmp.le.f32.partialorder %v174, 0.7853982
    %vm176 = vcmp.lt.s32.totalorder %v67, 0
    %v177 = vand.u32 %v67, 2139095040
    %v178 = vshrl.u32 %v177, 23
    %v179 = vsub.s32 %v178, 127
    %v180 = vand.u32 2147483647, %v67
    %v181 = vand.u32 %v180, 8388607
    %v182 = vor.u32 %v181, 8388608
    %v183 = vsub.s32 0, %v182
    %v184 = vadd.s32 %v179, 1
    %vm185 = vcmp.gt.s32.totalorder %v184, 0
    %v186 = vsel %vm185, %v184, 0
    %v187 = vshrl.u32 %v186, 5
    %v188 = vand.u32 %v186, 31
    %v189 = vsub.s32 32, %v188
    %v190 = vshrl.u32 683565275, %v189
    %v191 = vshll.u32 683565275, %v188
    %v192 = vshrl.u32 2475754826, %v189
    %v193 = vor.u32 %v191, %v192
    %v194 = vshll.u32 2475754826, %v188
    %v195 = vshrl.u32 2131351028, %v189
    %v196 = vor.u32 %v194, %v195
    %v197 = vshll.u32 2131351028, %v188
    %v198 = vshrl.u32 2102212464, %v189
    %v199 = vor.u32 %v197, %v198
    %v200 = vshll.u32 2102212464, %v188
    %v201 = vshrl.u32 920167782, %v189
    %v202 = vor.u32 %v200, %v201
    %v203 = vshll.u32 920167782, %v188
    %v204 = vshrl.u32 1326507024, %v189
    %v205 = vor.u32 %v203, %v204
    %vm206 = vcmp.lt.s32.totalorder %v187, 1
    %vm207 = vcmp.lt.s32.totalorder %v187, 2
    %vm208 = vcmp.lt.s32.totalorder %v187, 3
    %vm209 = vcmp.lt.s32.totalorder %v187, 4
    %v210 = vsel %vm206, %v190, %v193
    %v211 = vsel %vm209, %v199, 2102212464
    %v212 = vsel %vm208, %v196, %v211
    %v213 = vsel %vm207, %v210, %v212
    %v214 = vsel %vm206, %v193, %v196
    %v215 = vsel %vm209, %v202, 920167782
    %v216 = vsel %vm208, %v199, %v215
    %v217 = vsel %vm207, %v214, %v216
    %v218 = vsel %vm206, %v196, %v199
    %v219 = vsel %vm209, %v205, 1326507024
    %v220 = vsel %vm208, %v202, %v219
    %v221 = vsel %vm207, %v218, %v220
    %v222 = vshll.u32 %v182, 8
    %v223 = vmul.u32.u64.compose %v222, %v221
    %v224 = vextract.low.u32 %v223
    %v225 = vextract.high.u32 %v223
    %v226 = vmul.u32.u64.compose %v222, %v217
    %v227 = vextract.low.u32 %v226
    %v228 = vextract.high.u32 %v226
    %v229 = vmul.u32 %v222, %v213
    %v230 = vadd.s32 %v225, %v227
    %vm231 = vc.u32 %v225, %v227
    %v232 = vadd.s32 %v228, 1
    %v233 = vsel %vm231, %v232, %v228
    %v234 = vadd.s32 %v229, %v233
    %v235 = vadd.s32 %v234, 536870912
    %v236 = vshrl.u32 %v235, 30
    %v237 = vshll.u32 %v236, 30
    %v238 = vsub.s32 %v234, %v237
    %vm239 = vcmp.lt.s32.totalorder %v238, 0
    %v240 = vsub.s32 0, %v238
    %v241 = vsel %vm239, %v240, %v238
    %v242 = vclz %v241
    %v243 = vsub.s32 %v242, 2
    %vm244 = vcmp.gt.s32.totalorder 0, %v243
    %v245 = vsel %vm244, 0, %v243
    %v246 = vsub.s32 32, %v245
    %v247 = vshll.u32 %v238, %v245
    %v248 = vshrl.u32 %v230, %v246
    %v249 = vor.u32 %v247, %v248
    %v250 = vsub.s32 4294967266, %v245
    %v251 = vadd.s32 %v250, 127
    %v252 = vshll.u32 %v251, 23
    %v253 = vor.u32 4788187, %v252
    %v254 = vand.u32 2147483647, %v253
    %v256 = vcvt.s32.f32 %v249
    %v257 = vmul.f32 %v256, %v254
    %v258 = vxor.u32 %v257, 2147483648
    %v259 = vsel %vm176, %v258, %v257
    %v260 = vsub.s32 4, %v236
    %v261 = vsel %vm176, %v260, %v236
    %v262 = vsel %vm175, %v67, %v259
    %v263 = vsel %vm175, 0, %v261
    %v264 = vcosq.f32.pop %v262
    %v265 = vsinq.f32.pop %v262
    %vm266 = vweird.f32 %v67
    %v267 = vand.u32 %v263, 3
    %vm268 = vcmp.lt.s32.totalorder %v267, 2
    %vm269 = vcmp.eq.s32.totalorder %v267, 0
    %v270 = vxor.u32 %v265, 2147483648
    %v271 = vsel %vm269, %v264, %v270
    %vm272 = vcmp.eq.s32.totalorder %v267, 2
    %v273 = vxor.u32 %v264, 2147483648
    %v274 = vsel %vm272, %v273, %v265
    %v275 = vsel %vm268, %v271, %v274
    %v276 = vsel %vm266, nan, %v275
    %v277 = vpack.c.bf16 %v276, %v276
    %278 = vst [vmem:[#allocation2 + $0x4] sm:$0xf] %v277
    %v279 = vld [vmem:[#allocation2] sm:$0xff]
    %v280 = vld [vmem:[#allocation3] sm:$0xf]
    %v281 = vld [vmem:[#allocation3 + $0x4] sm:$0xf]
    %v282 = vld [vmem:[#allocation3 + $0x8] sm:$0xf]
    %v283 = vld [vmem:[#allocation3 + $0xc] sm:$0xf]
    %v284 = vld [vmem:[#allocation3 + $0x10] sm:$0xf]
    %v285 = vld [vmem:[#allocation3 + $0x14] sm:$0xf]
    %v286 = vld [vmem:[#allocation3 + $0x18] sm:$0xf]
    %v287 = vld [vmem:[#allocation3 + $0x1c] sm:$0xf]
    %v288 = vld [vmem:[#allocation3 + $0x20] sm:$0xf]
    %v289 = vld [vmem:[#allocation3 + $0x24] sm:$0xf]
    %v290 = vld [vmem:[#allocation3 + $0x28] sm:$0xf]
    %v291 = vld [vmem:[#allocation3 + $0x2c] sm:$0xf]
    %v292 = vld [vmem:[#allocation3 + $0x30] sm:$0xf]
    %v293 = vld [vmem:[#allocation3 + $0x34] sm:$0xf]
    %v294 = vld [vmem:[#allocation3 + $0x38] sm:$0xf]
    %v295 = vld [vmem:[#allocation3 + $0x3c] sm:$0xf]
    %v296 = vld [vmem:[#allocation3 + $0x40] sm:$0xf]
    %v297 = vld [vmem:[#allocation3 + $0x44] sm:$0xf]
    %v298 = vld [vmem:[#allocation3 + $0x48] sm:$0xf]
    %v299 = vld [vmem:[#allocation3 + $0x4c] sm:$0xf]
    %v300 = vld [vmem:[#allocation3 + $0x50] sm:$0xf]
    %v301 = vld [vmem:[#allocation3 + $0x54] sm:$0xf]
    %v302 = vld [vmem:[#allocation3 + $0x58] sm:$0xf]
    %v303 = vld [vmem:[#allocation3 + $0x5c] sm:$0xf]
    %v304 = vld [vmem:[#allocation3 + $0x60] sm:$0xf]
    %v305 = vld [vmem:[#allocation3 + $0x64] sm:$0xf]
    %v306 = vld [vmem:[#allocation3 + $0x68] sm:$0xf]
    %v307 = vld [vmem:[#allocation3 + $0x6c] sm:$0xf]
    %v308 = vld [vmem:[#allocation3 + $0x70] sm:$0xf]
    %v309 = vld [vmem:[#allocation3 + $0x74] sm:$0xf]
    %v310 = vld [vmem:[#allocation3 + $0x78] sm:$0xf]
    %v311 = vld [vmem:[#allocation3 + $0x7c] sm:$0xf]
    %v312 = vld [vmem:[%s3] sm:$0x1]
    %v314 = vlaneseq
    %v315 = vshrl.u32 %v314, 7
    %v316 = vsub.s32 0, %v315
    %v317 = vrot.slane %v312, %v316
    %v320 = vunpack.c.l.b16 %v279
    %v321 = vunpack.c.h.b16 %v279
    %v322 = vpack.c.b16 %v320, %v320
    %v323 = vpack.c.b16 %v321, %v321
    %v358 = vunpack.c.l.b16 %v280
    %v359 = vunpack.c.l.b16 %v281
    %v360 = vunpack.c.l.b16 %v282
    %v361 = vunpack.c.l.b16 %v283
    %v362 = vunpack.c.l.b16 %v284
    %v363 = vunpack.c.l.b16 %v285
    %v364 = vunpack.c.l.b16 %v286
    %v365 = vunpack.c.l.b16 %v287
    %v366 = vunpack.c.l.b16 %v288
    %v367 = vunpack.c.l.b16 %v289
    %v368 = vunpack.c.l.b16 %v290
    %v369 = vunpack.c.l.b16 %v291
    %v370 = vunpack.c.l.b16 %v292
    %v371 = vunpack.c.l.b16 %v293
    %v372 = vunpack.c.l.b16 %v294
    %v373 = vunpack.c.l.b16 %v295
    %v374 = vunpack.c.l.b16 %v296
    %v375 = vunpack.c.l.b16 %v297
    %v376 = vunpack.c.l.b16 %v298
    %v377 = vunpack.c.l.b16 %v299
    %v378 = vunpack.c.l.b16 %v300
    %v379 = vunpack.c.l.b16 %v301
    %v380 = vunpack.c.l.b16 %v302
    %v381 = vunpack.c.l.b16 %v303
    %v382 = vunpack.c.l.b16 %v304
    %v383 = vunpack.c.l.b16 %v305
    %v384 = vunpack.c.l.b16 %v306
    %v385 = vunpack.c.l.b16 %v307
    %v386 = vunpack.c.l.b16 %v308
    %v387 = vunpack.c.l.b16 %v309
    %v388 = vunpack.c.l.b16 %v310
    %v389 = vunpack.c.l.b16 %v311
    %v390 = vpack.c.b16 %v359, %v358
    %v391 = vpack.c.b16 %v361, %v360
    %v392 = vpack.c.b16 %v363, %v362
    %v393 = vpack.c.b16 %v365, %v364
    %v394 = vpack.c.b16 %v367, %v366
    %v395 = vpack.c.b16 %v369, %v368
    %v396 = vpack.c.b16 %v371, %v370
    %v397 = vpack.c.b16 %v373, %v372
    %v398 = vpack.c.b16 %v375, %v374
    %v399 = vpack.c.b16 %v377, %v376
    %v400 = vpack.c.b16 %v379, %v378
    %v401 = vpack.c.b16 %v381, %v380
    %v402 = vpack.c.b16 %v383, %v382
    %v403 = vpack.c.b16 %v385, %v384
    %v404 = vpack.c.b16 %v387, %v386
    %v405 = vpack.c.b16 %v389, %v388
    %422 = vmatprep.subr.bf16.mxu0 0
    %423 = vmatpush1.bf16.msra.mxu0 %v390
    %424 = vmatprep.subr.bf16.mxu0 0
    %425 = vmatpush1.bf16.msra.mxu0 %v391
    %426 = vmatprep.subr.bf16.mxu0 0
    %427 = vmatpush1.bf16.msra.mxu0 %v392
    %428 = vmatprep.subr.bf16.mxu0 0
    %429 = vmatpush1.bf16.msra.mxu0 %v393
    %430 = vmatprep.subr.bf16.mxu0 0
    %431 = vmatpush1.bf16.msra.mxu0 %v394
    %432 = vmatprep.subr.bf16.mxu0 0
    %433 = vmatpush1.bf16.msra.mxu0 %v395
    %434 = vmatprep.subr.bf16.mxu0 0
    %435 = vmatpush1.bf16.msra.mxu0 %v396
    %436 = vmatprep.subr.bf16.mxu0 0
    %437 = vmatpush1.bf16.msra.mxu0 %v397
    %438 = vmatprep.subr.bf16.mxu0 0
    %439 = vmatpush1.bf16.msra.mxu0 %v398
    %440 = vmatprep.subr.bf16.mxu0 0
    %441 = vmatpush1.bf16.msra.mxu0 %v399
    %442 = vmatprep.subr.bf16.mxu0 0
    %443 = vmatpush1.bf16.msra.mxu0 %v400
    %444 = vmatprep.subr.bf16.mxu0 0
    %445 = vmatpush1.bf16.msra.mxu0 %v401
    %446 = vmatprep.subr.bf16.mxu0 0
    %447 = vmatpush1.bf16.msra.mxu0 %v402
    %448 = vmatprep.subr.bf16.mxu0 0
    %449 = vmatpush1.bf16.msra.mxu0 %v403
    %450 = vmatprep.subr.bf16.mxu0 0
    %451 = vmatpush1.bf16.msra.mxu0 %v404
    %452 = vmatprep.subr.bf16.mxu0 0
    %453 = vmatpush1.bf16.msra.mxu0 %v405
    %454 = vmatprep.mubr.bf16.mxu0 %v323
    %455 = vmatmul.mubr.bf16.gmra.mrb[0].mxu0 %v322
    %v456 = vpop.f32.mrb[0].mxu0
    %v457 = vadd.f32 %v317, %v456
    %v458 = vpop.f32.mrb[0].mxu0
    %v459 = vpop.f32.mrb[0].mxu0
    %v460 = vpop.f32.mrb[0].mxu0
    %461 = vdwg.mxu0
    %v462 = vpack.c.bf16 %v457, %v457
    %v463 = vxor.u32 %v462, 2147516416
    %v465 = vmul.bf16 %v463, 1069105081
    %v466 = vpow.bf16.pop %v465
    %v467 = vadd.bf16 %v466, 1065369472
    %v468 = vrcp.bf16.pop %v467
    %v469 = vmul.bf16 1065369472, %v468
    %v470 = vmul.bf16 %v462, %v469
    %v471 = vld [vmem:[#allocation6] sm:$0xf]
    %v472 = vld [vmem:[#allocation6 + $0x4] sm:$0xf]
    %v473 = vld [vmem:[#allocation6 + $0x8] sm:$0xf]
    %v474 = vld [vmem:[#allocation6 + $0xc] sm:$0xf]
    %v475 = vld [vmem:[#allocation6 + $0x10] sm:$0xf]
    %v476 = vld [vmem:[#allocation6 + $0x14] sm:$0xf]
    %v477 = vld [vmem:[#allocation6 + $0x18] sm:$0xf]
    %v478 = vld [vmem:[#allocation6 + $0x1c] sm:$0xf]
    %v479 = vld [vmem:[#allocation6 + $0x20] sm:$0xf]
    %v480 = vld [vmem:[#allocation6 + $0x24] sm:$0xf]
    %v481 = vld [vmem:[#allocation6 + $0x28] sm:$0xf]
    %v482 = vld [vmem:[#allocation6 + $0x2c] sm:$0xf]
    %v483 = vld [vmem:[#allocation6 + $0x30] sm:$0xf]
    %v484 = vld [vmem:[#allocation6 + $0x34] sm:$0xf]
    %v485 = vld [vmem:[#allocation6 + $0x38] sm:$0xf]
    %v486 = vld [vmem:[#allocation6 + $0x3c] sm:$0xf]
    %v487 = vld [vmem:[%s5] sm:$0x1]
    %v489 = vlaneseq
    %v490 = vshrl.u32 %v489, 7
    %v491 = vsub.s32 0, %v490
    %v492 = vrot.slane %v487, %v491
    %v510 = vunpack.c.l.b16 %v471
    %v511 = vunpack.c.l.b16 %v472
    %v512 = vunpack.c.l.b16 %v473
    %v513 = vunpack.c.l.b16 %v474
    %v514 = vunpack.c.l.b16 %v475
    %v515 = vunpack.c.l.b16 %v476
    %v516 = vunpack.c.l.b16 %v477
    %v517 = vunpack.c.l.b16 %v478
    %v518 = vunpack.c.l.b16 %v479
    %v519 = vunpack.c.l.b16 %v480
    %v520 = vunpack.c.l.b16 %v481
    %v521 = vunpack.c.l.b16 %v482
    %v522 = vunpack.c.l.b16 %v483
    %v523 = vunpack.c.l.b16 %v484
    %v524 = vunpack.c.l.b16 %v485
    %v525 = vunpack.c.l.b16 %v486
    %v526 = vpack.c.b16 %v511, %v510
    %v527 = vpack.c.b16 %v513, %v512
    %v528 = vpack.c.b16 %v515, %v514
    %v529 = vpack.c.b16 %v517, %v516
    %v530 = vpack.c.b16 %v519, %v518
    %v531 = vpack.c.b16 %v521, %v520
    %v532 = vpack.c.b16 %v523, %v522
    %v533 = vpack.c.b16 %v525, %v524
    %542 = vmatprep.subr.bf16.mxu0 0
    %543 = vmatpush1.bf16.msra.mxu0 %v526
    %544 = vmatprep.subr.bf16.mxu0 0
    %545 = vmatpush1.bf16.msra.mxu0 %v527
    %546 = vmatprep.subr.bf16.mxu0 0
    %547 = vmatpush1.bf16.msra.mxu0 %v528
    %548 = vmatprep.subr.bf16.mxu0 0
    %549 = vmatpush1.bf16.msra.mxu0 %v529
    %550 = vmatprep.subr.bf16.mxu0 0
    %551 = vmatpush1.bf16.msra.mxu0 %v530
    %552 = vmatprep.subr.bf16.mxu0 0
    %553 = vmatpush1.bf16.msra.mxu0 %v531
    %554 = vmatprep.subr.bf16.mxu0 0
    %555 = vmatpush1.bf16.msra.mxu0 %v532
    %556 = vmatprep.subr.bf16.mxu0 0
    %557 = vmatpush1.bf16.msra.mxu0 %v533
    %558 = vmatprep.subr.bf16.mxu0 0
    %559 = vmatpush1.bf16.msra.mxu0 0
    %560 = vmatprep.subr.bf16.mxu0 0
    %561 = vmatpush1.bf16.msra.mxu0 0
    %562 = vmatprep.subr.bf16.mxu0 0
    %563 = vmatpush1.bf16.msra.mxu0 0
    %564 = vmatprep.subr.bf16.mxu0 0
    %565 = vmatpush1.bf16.msra.mxu0 0
    %566 = vmatprep.subr.bf16.mxu0 0
    %567 = vmatpush1.bf16.msra.mxu0 0
    %568 = vmatprep.subr.bf16.mxu0 0
    %569 = vmatpush1.bf16.msra.mxu0 0
    %570 = vmatprep.subr.bf16.mxu0 0
    %571 = vmatpush1.bf16.msra.mxu0 0
    %572 = vmatprep.subr.bf16.mxu0 0
    %573 = vmatpush1.bf16.msra.mxu0 0
    %574 = vmatprep.mubr.bf16.mxu0 0
    %575 = vmatmul.mubr.bf16.gmra.mrb[0].mxu0 %v470
    %v576 = vpop.f32.mrb[0].mxu0
    %v577 = vadd.f32 %v492, %v576
    %v578 = vpop.f32.mrb[0].mxu0
    %v579 = vpop.f32.mrb[0].mxu0
    %v580 = vpop.f32.mrb[0].mxu0
    %581 = vdwg.mxu0
    %582 = vst [vmem:[#allocation8] sm:$0xff] %v577
    // Predicated region
    $region34: #{tpu_custom_call.1} parent=1 // pred_check
      _
    $region35: #{tpu_custom_call.1} parent=1 // pred_check_branch
      %584 = sbr.rel (0) target = $region37
    $region36: #{tpu_custom_call.1} parent=1 // pred_region
      %s586 = ssub.s32 128, 128
      %587 = vsyncadd [#allocation5], %s586
      %s589 = sshll.u32 [#allocation8], 4
      %s590 = int_to_ptr.vmem [resolvable:$true] %s589
      %592 = dma.vmem_to_hbm [thread:$0]  %s590, 128, %s6, [#allocation5]
    $region37: #{tpu_custom_call.1} parent=1 // pred_fallthru
      _
    // Predicated region
    $region38: #{tpu_custom_call.1} parent=1 // pred_check
      _
    $region39: #{tpu_custom_call.1} parent=1 // pred_check_branch
      %594 = sbr.rel (0) target = $region41
    $region40: #{tpu_custom_call.1} parent=1 // pred_region
      %595 = dma.done [#allocation5], 128
    $region41: #{tpu_custom_call.1} parent=1 // pred_fallthru
      _
    %596 = vsyncpa [#allocation4], 1
    %597 = vsyncpa [#allocation7], 1
    %598 = vsyncpa [#allocation5], 1

// kernel: tpu_custom_call.1
$region0: #{tpu_custom_call.1}
  #allocation0 [shape = 'u32[]', space=smem, size = 0x4, offset = 0x4, fixed_abs, tag = 'smem constant byte address 0x4 - core index']
  #allocation1 [shape = 'u32[144,128]{1,0:T(1,128)}', space=vmem, size = 0x12000, scoped, tag = 'internal scratch']
  #allocation2 [shape = 'bf16[8,256]{1,0:T(8,128)(2,1)}', space=vmem, size = 0x1000, scoped, tag = 'scratch operand']
  %s0 = inlined_call_operand.vmem [shape: f32[1,128], index: 0, kind: input, shape index: {}]
  %s1 = inlined_call_operand.vmem [shape: f32[8,1], index: 1, kind: input, shape index: {}]
  %s2 = inlined_call_operand.hbm [shape: bf16[256,128], index: 2, kind: input, shape index: {}]
  %s3 = inlined_call_operand.vmem [shape: f32[1,128], index: 3, kind: input, shape index: {}]
  %s4 = inlined_call_operand.hbm [shape: bf16[128,128], index: 4, kind: input, shape index: {}]
  %s5 = inlined_call_operand.vmem [shape: f32[1,128], index: 5, kind: input, shape index: {}]
  %s6 = inlined_call_operand.hbm [shape: f32[8,128], index: 6, kind: output, shape index: {}]
  %s7 = sld [smem:[#allocation0]]
  $region42: #{tpu_custom_call.1} parent=0
    _
  %s9 = ssub.s32 1, %s7
  %s10 = scalar_select 0, %s9, %s7
  $region1: #{tpu_custom_call.1} parent=0
    #allocation3 [shape = 'u8[65536]{0}', space=vmem, size = 0x10000, scoped, tag = 'input window, operand 2, single buffered']
    #allocation4 [shape = 's32[1]{0}', space=sflag, size = 0x4, scoped, tag = 'scoped memory for tpu_custom_call.1']
    #allocation5 [shape = 's32[1]{0}', space=sflag, size = 0x4, scoped, tag = 'scoped memory for tpu_custom_call.1']
    #allocation6 [shape = 'u8[32768]{0}', space=vmem, size = 0x8000, scoped, tag = 'input window, operand 4, single buffered']
    #allocation7 [shape = 's32[1]{0}', space=sflag, size = 0x4, scoped, tag = 'scoped memory for tpu_custom_call.1']
    #allocation8 [shape = 'u8[4096]{0}', space=vmem, size = 0x1000, scoped, tag = 'output window, operand 0, single buffered']
    %11 = vsyncpa [#allocation4], 0
    %12 = vsyncpa [#allocation7], 0
    %13 = vsyncpa [#allocation5], 0
    // Predicated region
    $region2: #{tpu_custom_call.1} parent=1 // pred_check
      _
    $region3: #{tpu_custom_call.1} parent=1 // pred_check_branch
      %15 = sbr.rel (0) target = $region5
    $region4: #{tpu_custom_call.1} parent=1 // pred_region
      _
    $region5: #{tpu_custom_call.1} parent=1 // pred_fallthru
      _
    // Predicated region
    $region6: #{tpu_custom_call.1} parent=1 // pred_check
      _
    $region7: #{tpu_custom_call.1} parent=1 // pred_check_branch
      %17 = sbr.rel (0) target = $region9
    $region8: #{tpu_custom_call.1} parent=1 // pred_region
      _
    $region9: #{tpu_custom_call.1} parent=1 // pred_fallthru
      _
    // Predicated region
    $region10: #{tpu_custom_call.1} parent=1 // pred_check
      _
    $region11: #{tpu_custom_call.1} parent=1 // pred_check_branch
      %19 = sbr.rel (0) target = $region13
    $region12: #{tpu_custom_call.1} parent=1 // pred_region
      %s21 = ssub.s32 2048, 2048
      %22 = vsyncadd [#allocation4], %s21
      %s23 = sshll.u32 [#allocation3], 4
      %s24 = int_to_ptr.vmem [resolvable:$true] %s23
      %29 = dma.hbm_to_vmem [thread:$0]  %s2, 2048, %s24, [#allocation4], 64, 64, 4
    $region13: #{tpu_custom_call.1} parent=1 // pred_fallthru
      _
    // Predicated region
    $region14: #{tpu_custom_call.1} parent=1 // pred_check
      _
    $region15: #{tpu_custom_call.1} parent=1 // pred_check_branch
      %31 = sbr.rel (0) target = $region17
    $region16: #{tpu_custom_call.1} parent=1 // pred_region
      _
    $region17: #{tpu_custom_call.1} parent=1 // pred_fallthru
      _
    // Predicated region
    $region18: #{tpu_custom_call.1} parent=1 // pred_check
      _
    $region19: #{tpu_custom_call.1} parent=1 // pred_check_branch
      %33 = sbr.rel (0) target = $region21
    $region20: #{tpu_custom_call.1} parent=1 // pred_region
      %s35 = ssub.s32 1024, 1024
      %36 = vsyncadd [#allocation7], %s35
      %s37 = sshll.u32 [#allocation6], 4
      %s38 = int_to_ptr.vmem [resolvable:$true] %s37
      %43 = dma.hbm_to_vmem [thread:$0]  %s4, 1024, %s38, [#allocation7], 64, 64, 4
    $region21: #{tpu_custom_call.1} parent=1 // pred_fallthru
      _
    // Predicated region
    $region22: #{tpu_custom_call.1} parent=1 // pred_check
      _
    $region23: #{tpu_custom_call.1} parent=1 // pred_check_branch
      %45 = sbr.rel (0) target = $region25
    $region24: #{tpu_custom_call.1} parent=1 // pred_region
      _
    $region25: #{tpu_custom_call.1} parent=1 // pred_fallthru
      _
    // Predicated region
    $region26: #{tpu_custom_call.1} parent=1 // pred_check
      _
    $region27: #{tpu_custom_call.1} parent=1 // pred_check_branch
      %47 = sbr.rel (0) target = $region29
    $region28: #{tpu_custom_call.1} parent=1 // pred_region
      %48 = dma.done [#allocation4], 2048
    $region29: #{tpu_custom_call.1} parent=1 // pred_fallthru
      _
    // Predicated region
    $region30: #{tpu_custom_call.1} parent=1 // pred_check
      _
    $region31: #{tpu_custom_call.1} parent=1 // pred_check_branch
      %50 = sbr.rel (0) target = $region33
    $region32: #{tpu_custom_call.1} parent=1 // pred_region
      %51 = dma.done [#allocation7], 1024
    $region33: #{tpu_custom_call.1} parent=1 // pred_fallthru
      _
    %v54 = vld [vmem:[%s1] sm:$0xff]
    %v55 = vld [vmem:[%s0] sm:$0x1]
    %57 = vset.pattern.permute.xlu0 0
    %58 = vperm.xlu0 %57, %v54
    %v59 = vpop.permute.xlu0 %58
    %v62 = vlaneseq
    %v63 = vshrl.u32 %v62, 7
    %v64 = vsub.s32 0, %v63
    %v65 = vrot.slane %v55, %v64
    %v67 = vmul.f32 %v59, %v65
    %v68 = vand.u32 2147483647, %v67
    %vm69 = vcmp.le.f32.partialorder %v68, 0.7853982
    %vm70 = vcmp.lt.s32.totalorder %v67, 0
    %v71 = vand.u32 %v67, 2139095040
    %v72 = vshrl.u32 %v71, 23
    %v73 = vsub.s32 %v72, 127
    %v74 = vand.u32 2147483647, %v67
    %v75 = vand.u32 %v74, 8388607
    %v76 = vor.u32 %v75, 8388608
    %v77 = vsub.s32 0, %v76
    %v78 = vadd.s32 %v73, 1
    %vm79 = vcmp.gt.s32.totalorder %v78, 0
    %v80 = vsel %vm79, %v78, 0
    %v81 = vshrl.u32 %v80, 5
    %v82 = vand.u32 %v80, 31
    %v83 = vsub.s32 32, %v82
    %v84 = vshrl.u32 683565275, %v83
    %v85 = vshll.u32 683565275, %v82
    %v86 = vshrl.u32 2475754826, %v83
    %v87 = vor.u32 %v85, %v86
    %v88 = vshll.u32 2475754826, %v82
    %v89 = vshrl.u32 2131351028, %v83
    %v90 = vor.u32 %v88, %v89
    %v91 = vshll.u32 2131351028, %v82
    %v92 = vshrl.u32 2102212464, %v83
    %v93 = vor.u32 %v91, %v92
    %v94 = vshll.u32 2102212464, %v82
    %v95 = vshrl.u32 920167782, %v83
    %v96 = vor.u32 %v94, %v95
    %v97 = vshll.u32 920167782, %v82
    %v98 = vshrl.u32 1326507024, %v83
    %v99 = vor.u32 %v97, %v98
    %vm100 = vcmp.lt.s32.totalorder %v81, 1
    %vm101 = vcmp.lt.s32.totalorder %v81, 2
    %vm102 = vcmp.lt.s32.totalorder %v81, 3
    %vm103 = vcmp.lt.s32.totalorder %v81, 4
    %v104 = vsel %vm100, %v84, %v87
    %v105 = vsel %vm103, %v93, 2102212464
    %v106 = vsel %vm102, %v90, %v105
    %v107 = vsel %vm101, %v104, %v106
    %v108 = vsel %vm100, %v87, %v90
    %v109 = vsel %vm103, %v96, 920167782
    %v110 = vsel %vm102, %v93, %v109
    %v111 = vsel %vm101, %v108, %v110
    %v112 = vsel %vm100, %v90, %v93
    %v113 = vsel %vm103, %v99, 1326507024
    %v114 = vsel %vm102, %v96, %v113
    %v115 = vsel %vm101, %v112, %v114
    %v116 = vshll.u32 %v76, 8
    %v117 = vmul.u32.u64.compose %v116, %v115
    %v118 = vextract.low.u32 %v117
    %v119 = vextract.high.u32 %v117
    %v120 = vmul.u32.u64.compose %v116, %v111
    %v121 = vextract.low.u32 %v120
    %v122 = vextract.high.u32 %v120
    %v123 = vmul.u32 %v116, %v107
    %v124 = vadd.s32 %v119, %v121
    %vm125 = vc.u32 %v119, %v121
    %v126 = vadd.s32 %v122, 1
    %v127 = vsel %vm125, %v126, %v122
    %v128 = vadd.s32 %v123, %v127
    %v129 = vadd.s32 %v128, 536870912
    %v130 = vshrl.u32 %v129, 30
    %v131 = vshll.u32 %v130, 30
    %v132 = vsub.s32 %v128, %v131
    %vm133 = vcmp.lt.s32.totalorder %v132, 0
    %v134 = vsub.s32 0, %v132
    %v135 = vsel %vm133, %v134, %v132
    %v136 = vclz %v135
    %v137 = vsub.s32 %v136, 2
    %vm138 = vcmp.gt.s32.totalorder 0, %v137
    %v139 = vsel %vm138, 0, %v137
    %v140 = vsub.s32 32, %v139
    %v141 = vshll.u32 %v132, %v139
    %v142 = vshrl.u32 %v124, %v140
    %v143 = vor.u32 %v141, %v142
    %v144 = vsub.s32 4294967266, %v139
    %v145 = vadd.s32 %v144, 127
    %v146 = vshll.u32 %v145, 23
    %v147 = vor.u32 4788187, %v146
    %v148 = vand.u32 2147483647, %v147
    %v150 = vcvt.s32.f32 %v143
    %v151 = vmul.f32 %v150, %v148
    %v152 = vxor.u32 %v151, 2147483648
    %v153 = vsel %vm70, %v152, %v151
    %v154 = vsub.s32 4, %v130
    %v155 = vsel %vm70, %v154, %v130
    %v156 = vsel %vm69, %v67, %v153
    %v157 = vsel %vm69, 0, %v155
    %v158 = vcosq.f32.pop %v156
    %v159 = vsinq.f32.pop %v156
    %vm160 = vweird.f32 %v67
    %v161 = vadd.s32 %v157, 3
    %v162 = vand.u32 %v161, 3
    %vm163 = vcmp.lt.s32.totalorder %v162, 2
    %vm164 = vcmp.eq.s32.totalorder %v162, 0
    %v165 = vxor.u32 %v159, 2147483648
    %v166 = vsel %vm164, %v158, %v165
    %vm167 = vcmp.eq.s32.totalorder %v162, 2
    %v168 = vxor.u32 %v158, 2147483648
    %v169 = vsel %vm167, %v168, %v159
    %v170 = vsel %vm163, %v166, %v169
    %v171 = vsel %vm160, nan, %v170
    %v172 = vpack.c.bf16 %v171, %v171
    %173 = vst [vmem:[#allocation2] sm:$0xf] %v172
    %v174 = vand.u32 2147483647, %v67
    %vm175 = vcmp.le.f32.partialorder %v174, 0.7853982
    %vm176 = vcmp.lt.s32.totalorder %v67, 0
    %v177 = vand.u32 %v67, 2139095040
    %v178 = vshrl.u32 %v177, 23
    %v179 = vsub.s32 %v178, 127
    %v180 = vand.u32 2147483647, %v67
    %v181 = vand.u32 %v180, 8388607
    %v182 = vor.u32 %v181, 8388608
    %v183 = vsub.s32 0, %v182
    %v184 = vadd.s32 %v179, 1
    %vm185 = vcmp.gt.s32.totalorder %v184, 0
    %v186 = vsel %vm185, %v184, 0
    %v187 = vshrl.u32 %v186, 5
    %v188 = vand.u32 %v186, 31
    %v189 = vsub.s32 32, %v188
    %v190 = vshrl.u32 683565275, %v189
    %v191 = vshll.u32 683565275, %v188
    %v192 = vshrl.u32 2475754826, %v189
    %v193 = vor.u32 %v191, %v192
    %v194 = vshll.u32 2475754826, %v188
    %v195 = vshrl.u32 2131351028, %v189
    %v196 = vor.u32 %v194, %v195
    %v197 = vshll.u32 2131351028, %v188
    %v198 = vshrl.u32 2102212464, %v189
    %v199 = vor.u32 %v197, %v198
    %v200 = vshll.u32 2102212464, %v188
    %v201 = vshrl.u32 920167782, %v189
    %v202 = vor.u32 %v200, %v201
    %v203 = vshll.u32 920167782, %v188
    %v204 = vshrl.u32 1326507024, %v189
    %v205 = vor.u32 %v203, %v204
    %vm206 = vcmp.lt.s32.totalorder %v187, 1
    %vm207 = vcmp.lt.s32.totalorder %v187, 2
    %vm208 = vcmp.lt.s32.totalorder %v187, 3
    %vm209 = vcmp.lt.s32.totalorder %v187, 4
    %v210 = vsel %vm206, %v190, %v193
    %v211 = vsel %vm209, %v199, 2102212464
    %v212 = vsel %vm208, %v196, %v211
    %v213 = vsel %vm207, %v210, %v212
    %v214 = vsel %vm206, %v193, %v196
    %v215 = vsel %vm209, %v202, 920167782
    %v216 = vsel %vm208, %v199, %v215
    %v217 = vsel %vm207, %v214, %v216
    %v218 = vsel %vm206, %v196, %v199
    %v219 = vsel %vm209, %v205, 1326507024
    %v220 = vsel %vm208, %v202, %v219
    %v221 = vsel %vm207, %v218, %v220
    %v222 = vshll.u32 %v182, 8
    %v223 = vmul.u32.u64.compose %v222, %v221
    %v224 = vextract.low.u32 %v223
    %v225 = vextract.high.u32 %v223
    %v226 = vmul.u32.u64.compose %v222, %v217
    %v227 = vextract.low.u32 %v226
    %v228 = vextract.high.u32 %v226
    %v229 = vmul.u32 %v222, %v213
    %v230 = vadd.s32 %v225, %v227
    %vm231 = vc.u32 %v225, %v227
    %v232 = vadd.s32 %v228, 1
    %v233 = vsel %vm231, %v232, %v228
    %v234 = vadd.s32 %v229, %v233
    %v235 = vadd.s32 %v234, 536870912
    %v236 = vshrl.u32 %v235, 30
    %v237 = vshll.u32 %v236, 30
    %v238 = vsub.s32 %v234, %v237
    %vm239 = vcmp.lt.s32.totalorder %v238, 0
    %v240 = vsub.s32 0, %v238
    %v241 = vsel %vm239, %v240, %v238
    %v242 = vclz %v241
    %v243 = vsub.s32 %v242, 2
    %vm244 = vcmp.gt.s32.totalorder 0, %v243
    %v245 = vsel %vm244, 0, %v243
    %v246 = vsub.s32 32, %v245
    %v247 = vshll.u32 %v238, %v245
    %v248 = vshrl.u32 %v230, %v246
    %v249 = vor.u32 %v247, %v248
    %v250 = vsub.s32 4294967266, %v245
    %v251 = vadd.s32 %v250, 127
    %v252 = vshll.u32 %v251, 23
    %v253 = vor.u32 4788187, %v252
    %v254 = vand.u32 2147483647, %v253
    %v256 = vcvt.s32.f32 %v249
    %v257 = vmul.f32 %v256, %v254
    %v258 = vxor.u32 %v257, 2147483648
    %v259 = vsel %vm176, %v258, %v257
    %v260 = vsub.s32 4, %v236
    %v261 = vsel %vm176, %v260, %v236
    %v262 = vsel %vm175, %v67, %v259
    %v263 = vsel %vm175, 0, %v261
    %v264 = vcosq.f32.pop %v262
    %v265 = vsinq.f32.pop %v262
    %vm266 = vweird.f32 %v67
    %v267 = vand.u32 %v263, 3
    %vm268 = vcmp.lt.s32.totalorder %v267, 2
    %vm269 = vcmp.eq.s32.totalorder %v267, 0
    %v270 = vxor.u32 %v265, 2147483648
    %v271 = vsel %vm269, %v264, %v270
    %vm272 = vcmp.eq.s32.totalorder %v267, 2
    %v273 = vxor.u32 %v264, 2147483648
    %v274 = vsel %vm272, %v273, %v265
    %v275 = vsel %vm268, %v271, %v274
    %v276 = vsel %vm266, nan, %v275
    %v277 = vpack.c.bf16 %v276, %v276
    %278 = vst [vmem:[#allocation2 + $0x4] sm:$0xf] %v277
    %v279 = vld [vmem:[#allocation2] sm:$0xff]
    %v280 = vld [vmem:[#allocation3] sm:$0xf]
    %v281 = vld [vmem:[#allocation3 + $0x4] sm:$0xf]
    %v282 = vld [vmem:[#allocation3 + $0x8] sm:$0xf]
    %v283 = vld [vmem:[#allocation3 + $0xc] sm:$0xf]
    %v284 = vld [vmem:[#allocation3 + $0x10] sm:$0xf]
    %v285 = vld [vmem:[#allocation3 + $0x14] sm:$0xf]
    %v286 = vld [vmem:[#allocation3 + $0x18] sm:$0xf]
    %v287 = vld [vmem:[#allocation3 + $0x1c] sm:$0xf]
    %v288 = vld [vmem:[#allocation3 + $0x20] sm:$0xf]
    %v289 = vld [vmem:[#allocation3 + $0x24] sm:$0xf]
    %v290 = vld [vmem:[#allocation3 + $0x28] sm:$0xf]
    %v291 = vld [vmem:[#allocation3 + $0x2c] sm:$0xf]
    %v292 = vld [vmem:[#allocation3 + $0x30] sm:$0xf]
    %v293 = vld [vmem:[#allocation3 + $0x34] sm:$0xf]
    %v294 = vld [vmem:[#allocation3 + $0x38] sm:$0xf]
    %v295 = vld [vmem:[#allocation3 + $0x3c] sm:$0xf]
    %v296 = vld [vmem:[#allocation3 + $0x40] sm:$0xf]
    %v297 = vld [vmem:[#allocation3 + $0x44] sm:$0xf]
    %v298 = vld [vmem:[#allocation3 + $0x48] sm:$0xf]
    %v299 = vld [vmem:[#allocation3 + $0x4c] sm:$0xf]
    %v300 = vld [vmem:[#allocation3 + $0x50] sm:$0xf]
    %v301 = vld [vmem:[#allocation3 + $0x54] sm:$0xf]
    %v302 = vld [vmem:[#allocation3 + $0x58] sm:$0xf]
    %v303 = vld [vmem:[#allocation3 + $0x5c] sm:$0xf]
    %v304 = vld [vmem:[#allocation3 + $0x60] sm:$0xf]
    %v305 = vld [vmem:[#allocation3 + $0x64] sm:$0xf]
    %v306 = vld [vmem:[#allocation3 + $0x68] sm:$0xf]
    %v307 = vld [vmem:[#allocation3 + $0x6c] sm:$0xf]
    %v308 = vld [vmem:[#allocation3 + $0x70] sm:$0xf]
    %v309 = vld [vmem:[#allocation3 + $0x74] sm:$0xf]
    %v310 = vld [vmem:[#allocation3 + $0x78] sm:$0xf]
    %v311 = vld [vmem:[#allocation3 + $0x7c] sm:$0xf]
    %v312 = vld [vmem:[%s3] sm:$0x1]
    %v314 = vlaneseq
    %v315 = vshrl.u32 %v314, 7
    %v316 = vsub.s32 0, %v315
    %v317 = vrot.slane %v312, %v316
    %v320 = vunpack.c.l.b16 %v279
    %v321 = vunpack.c.h.b16 %v279
    %v322 = vpack.c.b16 %v320, %v320
    %v323 = vpack.c.b16 %v321, %v321
    %v358 = vunpack.c.l.b16 %v280
    %v359 = vunpack.c.l.b16 %v281
    %v360 = vunpack.c.l.b16 %v282
    %v361 = vunpack.c.l.b16 %v283
    %v362 = vunpack.c.l.b16 %v284
    %v363 = vunpack.c.l.b16 %v285
    %v364 = vunpack.c.l.b16 %v286
    %v365 = vunpack.c.l.b16 %v287
    %v366 = vunpack.c.l.b16 %v288
    %v367 = vunpack.c.l.b16 %v289
    %v368 = vunpack.c.l.b16 %v290
    %v369 = vunpack.c.l.b16 %v291
    %v370 = vunpack.c.l.b16 %v292
    %v371 = vunpack.c.l.b16 %v293
    %v372 = vunpack.c.l.b16 %v294
    %v373 = vunpack.c.l.b16 %v295
    %v374 = vunpack.c.l.b16 %v296
    %v375 = vunpack.c.l.b16 %v297
    %v376 = vunpack.c.l.b16 %v298
    %v377 = vunpack.c.l.b16 %v299
    %v378 = vunpack.c.l.b16 %v300
    %v379 = vunpack.c.l.b16 %v301
    %v380 = vunpack.c.l.b16 %v302
    %v381 = vunpack.c.l.b16 %v303
    %v382 = vunpack.c.l.b16 %v304
    %v383 = vunpack.c.l.b16 %v305
    %v384 = vunpack.c.l.b16 %v306
    %v385 = vunpack.c.l.b16 %v307
    %v386 = vunpack.c.l.b16 %v308
    %v387 = vunpack.c.l.b16 %v309
    %v388 = vunpack.c.l.b16 %v310
    %v389 = vunpack.c.l.b16 %v311
    %v390 = vpack.c.b16 %v359, %v358
    %v391 = vpack.c.b16 %v361, %v360
    %v392 = vpack.c.b16 %v363, %v362
    %v393 = vpack.c.b16 %v365, %v364
    %v394 = vpack.c.b16 %v367, %v366
    %v395 = vpack.c.b16 %v369, %v368
    %v396 = vpack.c.b16 %v371, %v370
    %v397 = vpack.c.b16 %v373, %v372
    %v398 = vpack.c.b16 %v375, %v374
    %v399 = vpack.c.b16 %v377, %v376
    %v400 = vpack.c.b16 %v379, %v378
    %v401 = vpack.c.b16 %v381, %v380
    %v402 = vpack.c.b16 %v383, %v382
    %v403 = vpack.c.b16 %v385, %v384
    %v404 = vpack.c.b16 %v387, %v386
    %v405 = vpack.c.b16 %v389, %v388
    %422 = vmatprep.subr.bf16.mxu0 0
    %423 = vmatpush1.bf16.msra.mxu0 %v390
    %424 = vmatprep.subr.bf16.mxu0 0
    %425 = vmatpush1.bf16.msra.mxu0 %v391
    %426 = vmatprep.subr.bf16.mxu0 0
    %427 = vmatpush1.bf16.msra.mxu0 %v392
    %428 = vmatprep.subr.bf16.mxu0 0
    %429 = vmatpush1.bf16.msra.mxu0 %v393
    %430 = vmatprep.subr.bf16.mxu0 0
    %431 = vmatpush1.bf16.msra.mxu0 %v394
    %432 = vmatprep.subr.bf16.mxu0 0
    %433 = vmatpush1.bf16.msra.mxu0 %v395
    %434 = vmatprep.subr.bf16.mxu0 0
    %435 = vmatpush1.bf16.msra.mxu0 %v396
    %436 = vmatprep.subr.bf16.mxu0 0
    %437 = vmatpush1.bf16.msra.mxu0 %v397
    %438 = vmatprep.subr.bf16.mxu0 0
    %439 = vmatpush1.bf16.msra.mxu0 %v398
    %440 = vmatprep.subr.bf16.mxu0 0
    %441 = vmatpush1.bf16.msra.mxu0 %v399
    %442 = vmatprep.subr.bf16.mxu0 0
    %443 = vmatpush1.bf16.msra.mxu0 %v400
    %444 = vmatprep.subr.bf16.mxu0 0
    %445 = vmatpush1.bf16.msra.mxu0 %v401
    %446 = vmatprep.subr.bf16.mxu0 0
    %447 = vmatpush1.bf16.msra.mxu0 %v402
    %448 = vmatprep.subr.bf16.mxu0 0
    %449 = vmatpush1.bf16.msra.mxu0 %v403
    %450 = vmatprep.subr.bf16.mxu0 0
    %451 = vmatpush1.bf16.msra.mxu0 %v404
    %452 = vmatprep.subr.bf16.mxu0 0
    %453 = vmatpush1.bf16.msra.mxu0 %v405
    %454 = vmatprep.mubr.bf16.mxu0 %v323
    %455 = vmatmul.mubr.bf16.gmra.mrb[0].mxu0 %v322
    %v456 = vpop.f32.mrb[0].mxu0
    %v457 = vadd.f32 %v317, %v456
    %v458 = vpop.f32.mrb[0].mxu0
    %v459 = vpop.f32.mrb[0].mxu0
    %v460 = vpop.f32.mrb[0].mxu0
    %461 = vdwg.mxu0
    %v462 = vpack.c.bf16 %v457, %v457
    %v463 = vxor.u32 %v462, 2147516416
    %v465 = vmul.bf16 %v463, 1069105081
    %v466 = vpow.bf16.pop %v465
    %v467 = vadd.bf16 %v466, 1065369472
    %v468 = vrcp.bf16.pop %v467
    %v469 = vmul.bf16 1065369472, %v468
    %v470 = vmul.bf16 %v462, %v469
    %v471 = vld [vmem:[#allocation6] sm:$0xf]
    %v472 = vld [vmem:[#allocation6 + $0x4] sm:$0xf]
    %v473 = vld [vmem:[#allocation6 + $0x8] sm:$0xf]
    %v474 = vld [vmem:[#allocation6 + $0xc] sm:$0xf]
    %v475 = vld [vmem:[#allocation6 + $0x10] sm:$0xf]
    %v476 = vld [vmem:[#allocation6 + $0x14] sm:$0xf]
    %v477 = vld [vmem:[#allocation6 + $0x18] sm:$0xf]
    %v478 = vld [vmem:[#allocation6 + $0x1c] sm:$0xf]
    %v479 = vld [vmem:[#allocation6 + $0x20] sm:$0xf]
    %v480 = vld [vmem:[#allocation6 + $0x24] sm:$0xf]
    %v481 = vld [vmem:[#allocation6 + $0x28] sm:$0xf]
    %v482 = vld [vmem:[#allocation6 + $0x2c] sm:$0xf]
    %v483 = vld [vmem:[#allocation6 + $0x30] sm:$0xf]
    %v484 = vld [vmem:[#allocation6 + $0x34] sm:$0xf]
    %v485 = vld [vmem:[#allocation6 + $0x38] sm:$0xf]
    %v486 = vld [vmem:[#allocation6 + $0x3c] sm:$0xf]
    %v487 = vld [vmem:[%s5] sm:$0x1]
    %v489 = vlaneseq
    %v490 = vshrl.u32 %v489, 7
    %v491 = vsub.s32 0, %v490
    %v492 = vrot.slane %v487, %v491
    %v510 = vunpack.c.l.b16 %v471
    %v511 = vunpack.c.l.b16 %v472
    %v512 = vunpack.c.l.b16 %v473
    %v513 = vunpack.c.l.b16 %v474
    %v514 = vunpack.c.l.b16 %v475
    %v515 = vunpack.c.l.b16 %v476
    %v516 = vunpack.c.l.b16 %v477
    %v517 = vunpack.c.l.b16 %v478
    %v518 = vunpack.c.l.b16 %v479
    %v519 = vunpack.c.l.b16 %v480
    %v520 = vunpack.c.l.b16 %v481
    %v521 = vunpack.c.l.b16 %v482
    %v522 = vunpack.c.l.b16 %v483
    %v523 = vunpack.c.l.b16 %v484
    %v524 = vunpack.c.l.b16 %v485
    %v525 = vunpack.c.l.b16 %v486
    %v526 = vpack.c.b16 %v511, %v510
    %v527 = vpack.c.b16 %v513, %v512
    %v528 = vpack.c.b16 %v515, %v514
    %v529 = vpack.c.b16 %v517, %v516
    %v530 = vpack.c.b16 %v519, %v518
    %v531 = vpack.c.b16 %v521, %v520
    %v532 = vpack.c.b16 %v523, %v522
    %v533 = vpack.c.b16 %v525, %v524
    %542 = vmatprep.subr.bf16.mxu0 0
    %543 = vmatpush1.bf16.msra.mxu0 %v526
    %544 = vmatprep.subr.bf16.mxu0 0
    %545 = vmatpush1.bf16.msra.mxu0 %v527
    %546 = vmatprep.subr.bf16.mxu0 0
    %547 = vmatpush1.bf16.msra.mxu0 %v528
    %548 = vmatprep.subr.bf16.mxu0 0
    %549 = vmatpush1.bf16.msra.mxu0 %v529
    %550 = vmatprep.subr.bf16.mxu0 0
    %551 = vmatpush1.bf16.msra.mxu0 %v530
    %552 = vmatprep.subr.bf16.mxu0 0
    %553 = vmatpush1.bf16.msra.mxu0 %v531
    %554 = vmatprep.subr.bf16.mxu0 0
    %555 = vmatpush1.bf16.msra.mxu0 %v532
    %556 = vmatprep.subr.bf16.mxu0 0
    %557 = vmatpush1.bf16.msra.mxu0 %v533
    %558 = vmatprep.subr.bf16.mxu0 0
    %559 = vmatpush1.bf16.msra.mxu0 0
    %560 = vmatprep.subr.bf16.mxu0 0
    %561 = vmatpush1.bf16.msra.mxu0 0
    %562 = vmatprep.subr.bf16.mxu0 0
    %563 = vmatpush1.bf16.msra.mxu0 0
    %564 = vmatprep.subr.bf16.mxu0 0
    %565 = vmatpush1.bf16.msra.mxu0 0
    %566 = vmatprep.subr.bf16.mxu0 0
    %567 = vmatpush1.bf16.msra.mxu0 0
    %568 = vmatprep.subr.bf16.mxu0 0
    %569 = vmatpush1.bf16.msra.mxu0 0
    %570 = vmatprep.subr.bf16.mxu0 0
    %571 = vmatpush1.bf16.msra.mxu0 0
    %572 = vmatprep.subr.bf16.mxu0 0
    %573 = vmatpush1.bf16.msra.mxu0 0
    %574 = vmatprep.mubr.bf16.mxu0 0
    %575 = vmatmul.mubr.bf16.gmra.mrb[0].mxu0 %v470
    %v576 = vpop.f32.mrb[0].mxu0
    %v577 = vadd.f32 %v492, %v576
    %v578 = vpop.f32.mrb[0].mxu0
    %v579 = vpop.f32.mrb[0].mxu0
    %v580 = vpop.f32.mrb[0].mxu0
    %581 = vdwg.mxu0
    %582 = vst [vmem:[#allocation8] sm:$0xff] %v577
    // Predicated region
    $region34: #{tpu_custom_call.1} parent=1 // pred_check
      _
    $region35: #{tpu_custom_call.1} parent=1 // pred_check_branch
      %584 = sbr.rel (0) target = $region37
    $region36: #{tpu_custom_call.1} parent=1 // pred_region
      %s586 = ssub.s32 128, 128
      %587 = vsyncadd [#allocation5], %s586
      %s589 = sshll.u32 [#allocation8], 4
      %s590 = int_to_ptr.vmem [resolvable:$true] %s589
      %592 = dma.vmem_to_hbm [thread:$0]  %s590, 128, %s6, [#allocation5]
    $region37: #{tpu_custom_call.1} parent=1 // pred_fallthru
      _
    // Predicated region
    $region38: #{tpu_custom_call.1} parent=1 // pred_check
      _
    $region39: #{tpu_custom_call.1} parent=1 // pred_check_branch
      %594 = sbr.rel (0) target = $region41
    $region40: #{tpu_custom_call.1} parent=1 // pred_region
      %595 = dma.done [#allocation5], 128
    $region41: #{tpu_custom_call.1} parent=1 // pred_fallthru
      _
    %596 = vsyncpa [#allocation4], 1
    %597 = vsyncpa [#allocation7], 1
    %598 = vsyncpa [#allocation5], 1

</llo_original>
